<compile_context>
chip_gen: v6e
topology: v6e:2x2x1
jax: 0.10.0
libtpu: 0.0.40
codegen_flags: <defaults>
</compile_context>

<pallas_src>
import functools

import jax
import jax.numpy as jnp
from jax.experimental import pallas as pl
from jax.experimental.pallas import tpu as pltpu


def _round_up(x, m):
    return ((x + m - 1) // m) * m


def _vmem_capacity_bytes():
    """Physical VMEM per TensorCore; conservative fallback if the query is unavailable."""
    try:
        return int(pltpu.get_tpu_info().vmem_capacity_bytes)
    except Exception:
        return 64 * 1024 * 1024  # v7x per-TC VMEM (most restrictive)


def _per_pair_losses(stacked_ref, src_ref, dst_ref, *, n_chunk, n_chunks):
    """Masked per-pair BCE losses for one lane-dense pair tile -> (1, TILE_P) f32."""
    src = src_ref[...]                          # (1, TILE_P) i32, padded with -1
    dst = dst_ref[...]                          # (1, TILE_P) i32, padded with -1
    tile_p = src.shape[1]

    def chunk_contribution(base):
        # One (n_chunk, TILE_P) +-1 selection block:
        #   sel[n, p] = [base+n == src[p]] - [base+n == dst[p]]
        # Padded vertices are never selected, padded pairs (id == -1) give all-zero
        # columns, and src == dst pairs correctly cancel to 0.
        chunk = stacked_ref[:, pl.ds(base, n_chunk)]                 # (2, n_chunk)
        iota_n = jax.lax.broadcasted_iota(jnp.int32, (n_chunk, tile_p), 0) + base
        sel = ((iota_n == src).astype(jnp.float32)
               - (iota_n == dst).astype(jnp.float32))
        # Both gathered pairwise differences in one MXU contraction:
        #   (2, n_chunk) @ (n_chunk, TILE_P) -> (2, TILE_P)
        # Default matmul precision is numerically safe here: sel is exactly {-1,0,+1},
        # so each output is a sum of <= 2 unmodified f32 inputs (checked vs. the f32
        # reference at 1e-5).
        return jnp.dot(chunk, sel, preferred_element_type=jnp.float32)

    if n_chunks == 1:
        diffs = chunk_contribution(0)
    else:
        def body(c, acc):
            base = pl.multiple_of(c * n_chunk, 128)
            return acc + chunk_contribution(base)
        diffs = jax.lax.fori_loop(0, n_chunks, body,
                                  jnp.zeros((2, tile_p), jnp.float32))

    x = diffs[0:1, :]                           # (1, TILE_P) pred_diff (logits)
    t = diffs[1:2, :]                           # (1, TILE_P) targ_diff
    # Soft label y = sigmoid(targ_diff); numerically stable BCE-with-logits:
    #   max(x, 0) - x*y + log1p(exp(-|x|))
    y = jax.nn.sigmoid(t)
    per_pair = jnp.maximum(x, 0.0) - x * y + jnp.log1p(jnp.exp(-jnp.abs(x)))
    valid = (src >= 0).astype(jnp.float32)      # padded pairs contribute exactly 0
    return per_pair * valid


def _partial_sum_kernel(stacked_ref, src_ref, dst_ref, out_ref, *, n_chunk, n_chunks):
    """reduction='mean'/'sum': one lane-dense (1, 128) partial-sum row per pair tile."""
    per_pair = _per_pair_losses(stacked_ref, src_ref, dst_ref,
                                n_chunk=n_chunk, n_chunks=n_chunks)
    tile_total = jnp.sum(per_pair, axis=1, keepdims=True)        # (1, 1)
    lane = jax.lax.broadcasted_iota(jnp.int32, (1, 128), 1)
    out_ref[...] = jnp.where(lane == 0, tile_total, 0.0)         # lane-dense store


def _per_pair_kernel(stacked_ref, src_ref, dst_ref, out_ref, *, n_chunk, n_chunks):
    """reduction='none': lane-dense per-pair losses for this tile."""
    out_ref[...] = _per_pair_losses(stacked_ref, src_ref, dst_ref,
                                    n_chunk=n_chunk, n_chunks=n_chunks)


def pairwise_ranking_cross_entropy_loss(pred_betweenness, target_betweenness,
                                        src_ids, targ_ids, reduction="mean"):
    """JAX/Pallas equivalent of PairwiseRankingCrossEntropyLoss.forward."""
    assert pred_betweenness.shape == target_betweenness.shape
    assert src_ids.shape == targ_ids.shape
    assert reduction in ("mean", "sum", "none")

    n = int(pred_betweenness.shape[0])
    p = int(src_ids.shape[0])

    # ---------------- per-chip sizing ----------------
    vmem_cap = _vmem_capacity_bytes()
    big_vmem = vmem_cap >= 100 * 1024 * 1024            # v5e / v6e: 128 MiB per TC
    sel_budget = (8 if big_vmem else 4) * 1024 * 1024   # live one-hot workspace budget
    tile_target = 1024 if big_vmem else 512             # pair tile (multiple of 256)
    vmem_limit = min(vmem_cap // 2, 64 * 1024 * 1024)   # 32 MiB on v7x, 64 MiB else

    # Pair-axis tile: lane-dense, multiple of 256 (full MXU output width on v6e/v7x).
    tile_p = min(tile_target, _round_up(max(p, 1), 256))
    p_pad = _round_up(max(p, 1), tile_p)
    num_tiles = p_pad // tile_p

    # Vertex-axis chunk: ~3 co-live (n_chunk, tile_p) i32/f32 intermediates
    # (iota, masks, sel) -> ~12 B/element of live VMEM inside the kernel.
    n_chunk = (sel_budget // (12 * tile_p)) // 128 * 128
    n_chunk = max(128, min(n_chunk, _round_up(max(n, 1), 128)))
    n_pad = _round_up(max(n, 1), n_chunk)
    n_chunks = n_pad // n_chunk

    # Stack pred/targ into one (2, N_pad) MXU operand (padded vertices = 0).
    stacked = jnp.zeros((2, n_pad), jnp.float32)
    stacked = stacked.at[0, :n].set(pred_betweenness.astype(jnp.float32))
    stacked = stacked.at[1, :n].set(target_betweenness.astype(jnp.float32))

    # Lane-dense id rows, padded with -1 sentinels (masked inside the kernel).
    src2d = jnp.full((1, p_pad), -1, jnp.int32).at[0, :p].set(src_ids.astype(jnp.int32))
    dst2d = jnp.full((1, p_pad), -1, jnp.int32).at[0, :p].set(targ_ids.astype(jnp.int32))

    in_specs = [
        pl.BlockSpec((2, n_pad), lambda i: (0, 0)),     # betweenness: VMEM-resident
        pl.BlockSpec((1, tile_p), lambda i: (0, i)),    # src ids tile
        pl.BlockSpec((1, tile_p), lambda i: (0, i)),    # targ ids tile
    ]
    compiler_params = pltpu.CompilerParams(
        dimension_semantics=("parallel",),              # shard P-tiles across TCs
        vmem_limit_bytes=vmem_limit,
    )

    if reduction == "none":
        kernel = functools.partial(_per_pair_kernel, n_chunk=n_chunk, n_chunks=n_chunks)
        per_pair = pl.pallas_call(
            kernel,
            out_shape=jax.ShapeDtypeStruct((1, p_pad), jnp.float32),
            grid_spec=pltpu.PrefetchScalarGridSpec(
                num_scalar_prefetch=0,
                grid=(num_tiles,),
                in_specs=in_specs,
                out_specs=pl.BlockSpec((1, tile_p), lambda i: (0, i)),
            ),
            compiler_params=compiler_params,
        )(stacked, src2d, dst2d)
        return per_pair[0, :p]

    kernel = functools.partial(_partial_sum_kernel, n_chunk=n_chunk, n_chunks=n_chunks)
    partials = pl.pallas_call(
        kernel,
        out_shape=jax.ShapeDtypeStruct((1, num_tiles * 128), jnp.float32),
        grid_spec=pltpu.PrefetchScalarGridSpec(
            num_scalar_prefetch=0,
            grid=(num_tiles,),
            in_specs=in_specs,
            out_specs=pl.BlockSpec((1, 128), lambda i: (0, i)),
        ),
        compiler_params=compiler_params,
    )(stacked, src2d, dst2d)

    total = jnp.sum(partials)                   # padded pairs / lanes contribute 0
    if reduction == "sum":
        return total
    # 'mean': multiply by 1 / true_P (padding never biases the mean).
    return total * jnp.float32(1.0 / p)


def _reference_per_pair(pred, targ, src, dst):
    # Pure-JAX reference mirroring the PyTorch module (reduction='none').
    x = pred[src] - pred[dst]
    y = jax.nn.sigmoid(targ[src] - targ[dst])
    return jnp.maximum(x, 0.0) - x * y + jnp.log1p(jnp.exp(-jnp.abs(x)))


if __name__ == "__main__":
    key = jax.random.PRNGKey(0)
    k1, k2, k3, k4 = jax.random.split(key, 4)

    N = 32   # number of vertices
    P = 16   # number of ranking pairs

    pred_betweenness = jax.random.normal(k1, (N,), dtype=jnp.float32)
    target_betweenness = jax.random.normal(k2, (N,), dtype=jnp.float32)
    src_ids = jax.random.randint(k3, (P,), 0, N, dtype=jnp.int32)
    targ_ids = jax.random.randint(k4, (P,), 0, N, dtype=jnp.int32)

    # reduction='mean' (module default) — partial-sum kernel path.
    loss = pairwise_ranking_cross_entropy_loss(
        pred_betweenness, target_betweenness, src_ids, targ_ids, reduction="mean")
    loss = jax.block_until_ready(loss)

    ref_per_pair = _reference_per_pair(pred_betweenness, target_betweenness,
                                       src_ids, targ_ids)
    ref_mean = jnp.mean(ref_per_pair)
    assert jnp.allclose(loss, ref_mean, atol=1e-5, rtol=1e-5), (loss, ref_mean)

    # reduction='none' — per-pair kernel path.
    per_pair = pairwise_ranking_cross_entropy_loss(
        pred_betweenness, target_betweenness, src_ids, targ_ids, reduction="none")
    per_pair = jax.block_until_ready(per_pair)
    assert jnp.allclose(per_pair, ref_per_pair, atol=1e-5, rtol=1e-5)

    print("KERNEL_OK")
</pallas_src>

<mosaic_0001>
module attributes {stable_mosaic.version = 11 : i64} {
  func.func @_partial_sum_kernel(%arg0: i32, %arg1: memref<2x128xf32, #tpu.memory_space<vmem>>, %arg2: memref<1x256xi32, #tpu.memory_space<vmem>>, %arg3: memref<1x256xi32, #tpu.memory_space<vmem>>, %arg4: memref<1x128xf32, #tpu.memory_space<vmem>>) attributes {dimension_semantics = [#tpu.dimension_semantics<parallel>], iteration_bounds = array<i64: 1>, scalar_prefetch = 0 : i64, scratch_operands = 0 : i64, tpu.core_type = #tpu.core_type<tc>, window_params = [{pipeline_mode = #tpu.pipeline_mode<synchronous>, transform_indices = @transform_0, window_bounds = array<i64: 2, 128>}, {transform_indices = @transform_1, window_bounds = array<i64: 1, 256>}, {transform_indices = @transform_2, window_bounds = array<i64: 1, 256>}, {transform_indices = @transform_3, window_bounds = array<i64: 1, 128>}]} {
    %c0 = arith.constant 0 : index
    %c0_0 = arith.constant 0 : index
    %0 = vector.load %arg2[%c0, %c0_0] : memref<1x256xi32, #tpu.memory_space<vmem>>, vector<1x256xi32>
    %c0_1 = arith.constant 0 : index
    %c0_2 = arith.constant 0 : index
    %1 = vector.load %arg3[%c0_1, %c0_2] : memref<1x256xi32, #tpu.memory_space<vmem>>, vector<1x256xi32>
    %c0_3 = arith.constant 0 : index
    %c0_4 = arith.constant 0 : index
    %2 = vector.load %arg1[%c0_3, %c0_4] : memref<2x128xf32, #tpu.memory_space<vmem>>, vector<2x128xf32>
    %3 = tpu.iota {dimensions = array<i32: 0>} : vector<128x256xi32>
    %c0_i32 = arith.constant 0 : i32
    %4 = vector.broadcast %c0_i32 : i32 to vector<128x256xi32>
    %5 = arith.addi %3, %4 : vector<128x256xi32>
    %6 = vector.broadcast %0 : vector<1x256xi32> to vector<128x256xi32>
    %7 = arith.cmpi eq, %5, %6 : vector<128x256xi32>
    %8 = arith.extui %7 : vector<128x256xi1> to vector<128x256xi32>
    %9 = arith.sitofp %8 : vector<128x256xi32> to vector<128x256xf32>
    %10 = vector.broadcast %1 : vector<1x256xi32> to vector<128x256xi32>
    %11 = arith.cmpi eq, %5, %10 : vector<128x256xi32>
    %12 = arith.extui %11 : vector<128x256xi1> to vector<128x256xi32>
    %13 = arith.sitofp %12 : vector<128x256xi32> to vector<128x256xf32>
    %14 = arith.subf %9, %13 : vector<128x256xf32>
    %cst = arith.constant dense<0.000000e+00> : vector<2x256xf32>
    %15 = tpu.matmul %2, %14, %cst {dimension_numbers = #tpu.dot_dimension_numbers<[1], [0], [0], [1], [0, 0, 1, 1], [], []>} : vector<2x128xf32>, vector<128x256xf32>, vector<2x256xf32> -> vector<2x256xf32>
    %16 = vector.extract_strided_slice %15 {offsets = [0, 0], sizes = [1, 256], strides = [1, 1]} : vector<2x256xf32> to vector<1x256xf32>
    %17 = vector.extract_strided_slice %15 {offsets = [1, 0], sizes = [1, 256], strides = [1, 1]} : vector<2x256xf32> to vector<1x256xf32>
    %18 = arith.negf %17 : vector<1x256xf32>
    %19 = math.exp %18 : vector<1x256xf32>
    %cst_5 = arith.constant 1.000000e+00 : f32
    %20 = vector.broadcast %cst_5 : f32 to vector<1x256xf32>
    %21 = arith.addf %20, %19 : vector<1x256xf32>
    %22 = arith.divf %20, %21 : vector<1x256xf32>
    %cst_6 = arith.constant 0.000000e+00 : f32
    %23 = vector.broadcast %cst_6 : f32 to vector<1x256xf32>
    %24 = arith.maximumf %16, %23 : vector<1x256xf32>
    %25 = arith.mulf %16, %22 : vector<1x256xf32>
    %26 = arith.subf %24, %25 : vector<1x256xf32>
    %27 = math.absf %16 : vector<1x256xf32>
    %cst_7 = arith.constant 0.000000e+00 : f32
    %28 = vector.broadcast %cst_7 : f32 to vector<1x256xf32>
    %29 = arith.subf %28, %27 : vector<1x256xf32>
    %30 = math.exp %29 : vector<1x256xf32>
    %31 = math.log1p %30 : vector<1x256xf32>
    %32 = arith.addf %26, %31 : vector<1x256xf32>
    %c0_i32_8 = arith.constant 0 : i32
    %33 = vector.broadcast %c0_i32_8 : i32 to vector<1x256xi32>
    %34 = arith.cmpi sge, %0, %33 : vector<1x256xi32>
    %35 = arith.extui %34 : vector<1x256xi1> to vector<1x256xi32>
    %36 = arith.sitofp %35 : vector<1x256xi32> to vector<1x256xf32>
    %37 = arith.mulf %32, %36 : vector<1x256xf32>
    %cst_9 = arith.constant dense<0.000000e+00> : vector<1xf32>
    %38 = vector.multi_reduction <add>, %37, %cst_9 [1] : vector<1x256xf32> to vector<1xf32>
    %39 = vector.shape_cast %38 : vector<1xf32> to vector<1x1xf32>
    %40 = tpu.iota {dimensions = array<i32: 1>} : vector<1x128xi32>
    %c0_i32_10 = arith.constant 0 : i32
    %41 = vector.broadcast %c0_i32_10 : i32 to vector<1x128xi32>
    %42 = arith.cmpi eq, %40, %41 : vector<1x128xi32>
    %cst_11 = arith.constant 0.000000e+00 : f32
    %43 = vector.shape_cast %39 : vector<1x1xf32> to vector<1x1xf32>
    %44 = vector.broadcast %43 : vector<1x1xf32> to vector<1x128xf32>
    %45 = vector.broadcast %cst_11 : f32 to vector<1x128xf32>
    %46 = arith.select %42, %44, %45 : vector<1x128xi1>, vector<1x128xf32>
    %c0_12 = arith.constant 0 : index
    %c0_13 = arith.constant 0 : index
    %47 = vector.load %arg4[%c0_12, %c0_13] : memref<1x128xf32, #tpu.memory_space<vmem>>, vector<1x128xf32>
    tpu.vector_store %arg4[%c0_12, %c0_13], %46 {strides = array<i32>} : memref<1x128xf32, #tpu.memory_space<vmem>>, vector<1x128xf32>,
    return
  }
  func.func @transform_0(%arg0: i32) -> (i32, i32) {
    %c0_i32 = arith.constant 0 : i32
    %c0_i32_0 = arith.constant 0 : i32
    %c0_i32_1 = arith.constant 0 : i32
    return %c0_i32, %c0_i32_0 : i32, i32
  }
  func.func @transform_1(%arg0: i32) -> (i32, i32) {
    %c0_i32 = arith.constant 0 : i32
    %c0_i32_0 = arith.constant 0 : i32
    return %c0_i32, %arg0 : i32, i32
  }
  func.func @transform_2(%arg0: i32) -> (i32, i32) {
    %c0_i32 = arith.constant 0 : i32
    %c0_i32_0 = arith.constant 0 : i32
    return %c0_i32, %arg0 : i32, i32
  }
  func.func @transform_3(%arg0: i32) -> (i32, i32) {
    %c0_i32 = arith.constant 0 : i32
    %c0_i32_0 = arith.constant 0 : i32
    return %c0_i32, %arg0 : i32, i32
  }
}

</mosaic_0001>

<llo_original>
// kernel: tpu_custom_call.1
$region0: #{tpu_custom_call.1}
  #allocation0 [shape = 'u32[]', space=smem, size = 0x4, offset = 0x4, fixed_abs, tag = 'smem constant byte address 0x4 - core index']
  #allocation1 [shape = 'u32[144,128]{1,0:T(1,128)}', space=vmem, size = 0x12000, scoped, tag = 'internal scratch']
  %s0 = inlined_call_operand.hbm [shape: f32[2,128], index: 0, kind: input, shape index: {}]
  %s1 = inlined_call_operand.hbm [shape: s32[1,256], index: 1, kind: input, shape index: {}]
  %s2 = inlined_call_operand.vmem [shape: s32[1,256], index: 2, kind: input, shape index: {}]
  %s3 = inlined_call_operand.hbm [shape: f32[1,128], index: 3, kind: output, shape index: {}]
  %s4 = sld [smem:[#allocation0]]
  $region30: #{tpu_custom_call.1} parent=0
    _
  %s6 = ssub.s32 1, %s4
  %s7 = scalar_select 0, %s6, %s4
  $region1: #{tpu_custom_call.1} parent=0
    #allocation2 [shape = 'u8[1024]{0}', space=vmem, size = 0x400, scoped, tag = 'input window, operand 0, single buffered']
    #allocation3 [shape = 's32[1]{0}', space=sflag, size = 0x4, scoped, tag = 'scoped memory for tpu_custom_call.1']
    #allocation4 [shape = 's32[1]{0}', space=sflag, size = 0x4, scoped, tag = 'scoped memory for tpu_custom_call.1']
    #allocation5 [shape = 'u8[1024]{0}', space=vmem, size = 0x400, scoped, tag = 'input window, operand 1, single buffered']
    #allocation6 [shape = 's32[1]{0}', space=sflag, size = 0x4, scoped, tag = 'scoped memory for tpu_custom_call.1']
    #allocation7 [shape = 'u8[512]{0}', space=vmem, size = 0x400, scoped, tag = 'output window, operand 0, single buffered']
    %8 = vsyncpa [#allocation3], 0
    %9 = vsyncpa [#allocation6], 0
    %10 = vsyncpa [#allocation4], 0
    // Predicated region
    $region2: #{tpu_custom_call.1} parent=1 // pred_check
      _
    $region3: #{tpu_custom_call.1} parent=1 // pred_check_branch
      %12 = sbr.rel (0) target = $region5
    $region4: #{tpu_custom_call.1} parent=1 // pred_region
      %s14 = ssub.s32 32, 32
      %15 = vsyncadd [#allocation3], %s14
      %s17 = sshll.u32 [#allocation2], 4
      %s18 = int_to_ptr.vmem [resolvable:$true] %s17
      %20 = dma.hbm_to_vmem [thread:$0]  %s0, 32, %s18, [#allocation3]
    $region5: #{tpu_custom_call.1} parent=1 // pred_fallthru
      _
    // Predicated region
    $region6: #{tpu_custom_call.1} parent=1 // pred_check
      _
    $region7: #{tpu_custom_call.1} parent=1 // pred_check_branch
      %22 = sbr.rel (0) target = $region9
    $region8: #{tpu_custom_call.1} parent=1 // pred_region
      %s24 = ssub.s32 32, 32
      %25 = vsyncadd [#allocation6], %s24
      %s27 = sshll.u32 [#allocation5], 4
      %s28 = int_to_ptr.vmem [resolvable:$true] %s27
      %30 = dma.hbm_to_vmem [thread:$0]  %s1, 32, %s28, [#allocation6]
    $region9: #{tpu_custom_call.1} parent=1 // pred_fallthru
      _
    // Predicated region
    $region10: #{tpu_custom_call.1} parent=1 // pred_check
      _
    $region11: #{tpu_custom_call.1} parent=1 // pred_check_branch
      %32 = sbr.rel (0) target = $region13
    $region12: #{tpu_custom_call.1} parent=1 // pred_region
      _
    $region13: #{tpu_custom_call.1} parent=1 // pred_fallthru
      _
    // Predicated region
    $region14: #{tpu_custom_call.1} parent=1 // pred_check
      _
    $region15: #{tpu_custom_call.1} parent=1 // pred_check_branch
      %34 = sbr.rel (0) target = $region17
    $region16: #{tpu_custom_call.1} parent=1 // pred_region
      %35 = dma.done [#allocation3], 32
    $region17: #{tpu_custom_call.1} parent=1 // pred_fallthru
      _
    // Predicated region
    $region18: #{tpu_custom_call.1} parent=1 // pred_check
      _
    $region19: #{tpu_custom_call.1} parent=1 // pred_check_branch
      %37 = sbr.rel (0) target = $region21
    $region20: #{tpu_custom_call.1} parent=1 // pred_region
      %38 = dma.done [#allocation6], 32
    $region21: #{tpu_custom_call.1} parent=1 // pred_fallthru
      _
    %v39 = vld [vmem:[#allocation5] sm:$0x3]
    %v40 = vld [vmem:[%s2] sm:$0x3]
    %v41 = vld [vmem:[#allocation2] sm:$0x3]
    %v42 = vlaneseq
    %v43 = vshrl.u32 %v42, 7
    %v44 = vadd.s32 %v43, 8
    %v45 = vadd.s32 %v43, 16
    %v46 = vadd.s32 %v43, 24
    %v47 = vadd.s32 %v43, 32
    %v48 = vadd.s32 %v43, 40
    %v49 = vadd.s32 %v43, 48
    %v50 = vadd.s32 %v43, 56
    %v51 = vadd.s32 %v43, 64
    %v52 = vadd.s32 %v43, 72
    %v53 = vadd.s32 %v43, 80
    %v54 = vadd.s32 %v43, 88
    %v55 = vadd.s32 %v43, 96
    %v56 = vadd.s32 %v43, 104
    %v57 = vadd.s32 %v43, 112
    %v58 = vadd.s32 %v43, 120
    %v59 = vlaneseq
    %v60 = vshrl.u32 %v59, 7
    %v61 = vsub.s32 0, %v60
    %v62 = vrot.slane %v39, %v61
    %v63 = vlaneseq
    %v64 = vshrl.u32 %v63, 7
    %v65 = vsub.s32 1, %v64
    %v66 = vrot.slane %v39, %v65
    %vm67 = vcmp.eq.s32.totalorder %v43, %v62
    %vm68 = vcmp.eq.s32.totalorder %v43, %v66
    %vm69 = vcmp.eq.s32.totalorder %v44, %v62
    %vm70 = vcmp.eq.s32.totalorder %v44, %v66
    %vm71 = vcmp.eq.s32.totalorder %v45, %v62
    %vm72 = vcmp.eq.s32.totalorder %v45, %v66
    %vm73 = vcmp.eq.s32.totalorder %v46, %v62
    %vm74 = vcmp.eq.s32.totalorder %v46, %v66
    %vm75 = vcmp.eq.s32.totalorder %v47, %v62
    %vm76 = vcmp.eq.s32.totalorder %v47, %v66
    %vm77 = vcmp.eq.s32.totalorder %v48, %v62
    %vm78 = vcmp.eq.s32.totalorder %v48, %v66
    %vm79 = vcmp.eq.s32.totalorder %v49, %v62
    %vm80 = vcmp.eq.s32.totalorder %v49, %v66
    %vm81 = vcmp.eq.s32.totalorder %v50, %v62
    %vm82 = vcmp.eq.s32.totalorder %v50, %v66
    %vm83 = vcmp.eq.s32.totalorder %v51, %v62
    %vm84 = vcmp.eq.s32.totalorder %v51, %v66
    %vm85 = vcmp.eq.s32.totalorder %v52, %v62
    %vm86 = vcmp.eq.s32.totalorder %v52, %v66
    %vm87 = vcmp.eq.s32.totalorder %v53, %v62
    %vm88 = vcmp.eq.s32.totalorder %v53, %v66
    %vm89 = vcmp.eq.s32.totalorder %v54, %v62
    %vm90 = vcmp.eq.s32.totalorder %v54, %v66
    %vm91 = vcmp.eq.s32.totalorder %v55, %v62
    %vm92 = vcmp.eq.s32.totalorder %v55, %v66
    %vm93 = vcmp.eq.s32.totalorder %v56, %v62
    %vm94 = vcmp.eq.s32.totalorder %v56, %v66
    %vm95 = vcmp.eq.s32.totalorder %v57, %v62
    %vm96 = vcmp.eq.s32.totalorder %v57, %v66
    %vm97 = vcmp.eq.s32.totalorder %v58, %v62
    %vm98 = vcmp.eq.s32.totalorder %v58, %v66
    %v99 = vsel %vm67, 1, 0
    %v100 = vsel %vm68, 1, 0
    %v101 = vsel %vm69, 1, 0
    %v102 = vsel %vm70, 1, 0
    %v103 = vsel %vm71, 1, 0
    %v104 = vsel %vm72, 1, 0
    %v105 = vsel %vm73, 1, 0
    %v106 = vsel %vm74, 1, 0
    %v107 = vsel %vm75, 1, 0
    %v108 = vsel %vm76, 1, 0
    %v109 = vsel %vm77, 1, 0
    %v110 = vsel %vm78, 1, 0
    %v111 = vsel %vm79, 1, 0
    %v112 = vsel %vm80, 1, 0
    %v113 = vsel %vm81, 1, 0
    %v114 = vsel %vm82, 1, 0
    %v115 = vsel %vm83, 1, 0
    %v116 = vsel %vm84, 1, 0
    %v117 = vsel %vm85, 1, 0
    %v118 = vsel %vm86, 1, 0
    %v119 = vsel %vm87, 1, 0
    %v120 = vsel %vm88, 1, 0
    %v121 = vsel %vm89, 1, 0
    %v122 = vsel %vm90, 1, 0
    %v123 = vsel %vm91, 1, 0
    %v124 = vsel %vm92, 1, 0
    %v125 = vsel %vm93, 1, 0
    %v126 = vsel %vm94, 1, 0
    %v127 = vsel %vm95, 1, 0
    %v128 = vsel %vm96, 1, 0
    %v129 = vsel %vm97, 1, 0
    %v130 = vsel %vm98, 1, 0
    %v131 = vcvt.s32.f32 %v99
    %v132 = vcvt.s32.f32 %v100
    %v133 = vcvt.s32.f32 %v101
    %v134 = vcvt.s32.f32 %v102
    %v135 = vcvt.s32.f32 %v103
    %v136 = vcvt.s32.f32 %v104
    %v137 = vcvt.s32.f32 %v105
    %v138 = vcvt.s32.f32 %v106
    %v139 = vcvt.s32.f32 %v107
    %v140 = vcvt.s32.f32 %v108
    %v141 = vcvt.s32.f32 %v109
    %v142 = vcvt.s32.f32 %v110
    %v143 = vcvt.s32.f32 %v111
    %v144 = vcvt.s32.f32 %v112
    %v145 = vcvt.s32.f32 %v113
    %v146 = vcvt.s32.f32 %v114
    %v147 = vcvt.s32.f32 %v115
    %v148 = vcvt.s32.f32 %v116
    %v149 = vcvt.s32.f32 %v117
    %v150 = vcvt.s32.f32 %v118
    %v151 = vcvt.s32.f32 %v119
    %v152 = vcvt.s32.f32 %v120
    %v153 = vcvt.s32.f32 %v121
    %v154 = vcvt.s32.f32 %v122
    %v155 = vcvt.s32.f32 %v123
    %v156 = vcvt.s32.f32 %v124
    %v157 = vcvt.s32.f32 %v125
    %v158 = vcvt.s32.f32 %v126
    %v159 = vcvt.s32.f32 %v127
    %v160 = vcvt.s32.f32 %v128
    %v161 = vcvt.s32.f32 %v129
    %v162 = vcvt.s32.f32 %v130
    %v163 = vlaneseq
    %v164 = vshrl.u32 %v163, 7
    %v165 = vsub.s32 0, %v164
    %v166 = vrot.slane %v40, %v165
    %v167 = vlaneseq
    %v168 = vshrl.u32 %v167, 7
    %v169 = vsub.s32 1, %v168
    %v170 = vrot.slane %v40, %v169
    %vm171 = vcmp.eq.s32.totalorder %v43, %v166
    %vm172 = vcmp.eq.s32.totalorder %v43, %v170
    %vm173 = vcmp.eq.s32.totalorder %v44, %v166
    %vm174 = vcmp.eq.s32.totalorder %v44, %v170
    %vm175 = vcmp.eq.s32.totalorder %v45, %v166
    %vm176 = vcmp.eq.s32.totalorder %v45, %v170
    %vm177 = vcmp.eq.s32.totalorder %v46, %v166
    %vm178 = vcmp.eq.s32.totalorder %v46, %v170
    %vm179 = vcmp.eq.s32.totalorder %v47, %v166
    %vm180 = vcmp.eq.s32.totalorder %v47, %v170
    %vm181 = vcmp.eq.s32.totalorder %v48, %v166
    %vm182 = vcmp.eq.s32.totalorder %v48, %v170
    %vm183 = vcmp.eq.s32.totalorder %v49, %v166
    %vm184 = vcmp.eq.s32.totalorder %v49, %v170
    %vm185 = vcmp.eq.s32.totalorder %v50, %v166
    %vm186 = vcmp.eq.s32.totalorder %v50, %v170
    %vm187 = vcmp.eq.s32.totalorder %v51, %v166
    %vm188 = vcmp.eq.s32.totalorder %v51, %v170
    %vm189 = vcmp.eq.s32.totalorder %v52, %v166
    %vm190 = vcmp.eq.s32.totalorder %v52, %v170
    %vm191 = vcmp.eq.s32.totalorder %v53, %v166
    %vm192 = vcmp.eq.s32.totalorder %v53, %v170
    %vm193 = vcmp.eq.s32.totalorder %v54, %v166
    %vm194 = vcmp.eq.s32.totalorder %v54, %v170
    %vm195 = vcmp.eq.s32.totalorder %v55, %v166
    %vm196 = vcmp.eq.s32.totalorder %v55, %v170
    %vm197 = vcmp.eq.s32.totalorder %v56, %v166
    %vm198 = vcmp.eq.s32.totalorder %v56, %v170
    %vm199 = vcmp.eq.s32.totalorder %v57, %v166
    %vm200 = vcmp.eq.s32.totalorder %v57, %v170
    %vm201 = vcmp.eq.s32.totalorder %v58, %v166
    %vm202 = vcmp.eq.s32.totalorder %v58, %v170
    %v203 = vsel %vm171, 1, 0
    %v204 = vsel %vm172, 1, 0
    %v205 = vsel %vm173, 1, 0
    %v206 = vsel %vm174, 1, 0
    %v207 = vsel %vm175, 1, 0
    %v208 = vsel %vm176, 1, 0
    %v209 = vsel %vm177, 1, 0
    %v210 = vsel %vm178, 1, 0
    %v211 = vsel %vm179, 1, 0
    %v212 = vsel %vm180, 1, 0
    %v213 = vsel %vm181, 1, 0
    %v214 = vsel %vm182, 1, 0
    %v215 = vsel %vm183, 1, 0
    %v216 = vsel %vm184, 1, 0
    %v217 = vsel %vm185, 1, 0
    %v218 = vsel %vm186, 1, 0
    %v219 = vsel %vm187, 1, 0
    %v220 = vsel %vm188, 1, 0
    %v221 = vsel %vm189, 1, 0
    %v222 = vsel %vm190, 1, 0
    %v223 = vsel %vm191, 1, 0
    %v224 = vsel %vm192, 1, 0
    %v225 = vsel %vm193, 1, 0
    %v226 = vsel %vm194, 1, 0
    %v227 = vsel %vm195, 1, 0
    %v228 = vsel %vm196, 1, 0
    %v229 = vsel %vm197, 1, 0
    %v230 = vsel %vm198, 1, 0
    %v231 = vsel %vm199, 1, 0
    %v232 = vsel %vm200, 1, 0
    %v233 = vsel %vm201, 1, 0
    %v234 = vsel %vm202, 1, 0
    %v235 = vcvt.s32.f32 %v203
    %v236 = vcvt.s32.f32 %v204
    %v237 = vcvt.s32.f32 %v205
    %v238 = vcvt.s32.f32 %v206
    %v239 = vcvt.s32.f32 %v207
    %v240 = vcvt.s32.f32 %v208
    %v241 = vcvt.s32.f32 %v209
    %v242 = vcvt.s32.f32 %v210
    %v243 = vcvt.s32.f32 %v211
    %v244 = vcvt.s32.f32 %v212
    %v245 = vcvt.s32.f32 %v213
    %v246 = vcvt.s32.f32 %v214
    %v247 = vcvt.s32.f32 %v215
    %v248 = vcvt.s32.f32 %v216
    %v249 = vcvt.s32.f32 %v217
    %v250 = vcvt.s32.f32 %v218
    %v251 = vcvt.s32.f32 %v219
    %v252 = vcvt.s32.f32 %v220
    %v253 = vcvt.s32.f32 %v221
    %v254 = vcvt.s32.f32 %v222
    %v255 = vcvt.s32.f32 %v223
    %v256 = vcvt.s32.f32 %v224
    %v257 = vcvt.s32.f32 %v225
    %v258 = vcvt.s32.f32 %v226
    %v259 = vcvt.s32.f32 %v227
    %v260 = vcvt.s32.f32 %v228
    %v261 = vcvt.s32.f32 %v229
    %v262 = vcvt.s32.f32 %v230
    %v263 = vcvt.s32.f32 %v231
    %v264 = vcvt.s32.f32 %v232
    %v265 = vcvt.s32.f32 %v233
    %v266 = vcvt.s32.f32 %v234
    %v267 = vsub.f32 %v131, %v235
    %v268 = vsub.f32 %v132, %v236
    %v269 = vsub.f32 %v133, %v237
    %v270 = vsub.f32 %v134, %v238
    %v271 = vsub.f32 %v135, %v239
    %v272 = vsub.f32 %v136, %v240
    %v273 = vsub.f32 %v137, %v241
    %v274 = vsub.f32 %v138, %v242
    %v275 = vsub.f32 %v139, %v243
    %v276 = vsub.f32 %v140, %v244
    %v277 = vsub.f32 %v141, %v245
    %v278 = vsub.f32 %v142, %v246
    %v279 = vsub.f32 %v143, %v247
    %v280 = vsub.f32 %v144, %v248
    %v281 = vsub.f32 %v145, %v249
    %v282 = vsub.f32 %v146, %v250
    %v283 = vsub.f32 %v147, %v251
    %v284 = vsub.f32 %v148, %v252
    %v285 = vsub.f32 %v149, %v253
    %v286 = vsub.f32 %v150, %v254
    %v287 = vsub.f32 %v151, %v255
    %v288 = vsub.f32 %v152, %v256
    %v289 = vsub.f32 %v153, %v257
    %v290 = vsub.f32 %v154, %v258
    %v291 = vsub.f32 %v155, %v259
    %v292 = vsub.f32 %v156, %v260
    %v293 = vsub.f32 %v157, %v261
    %v294 = vsub.f32 %v158, %v262
    %v295 = vsub.f32 %v159, %v263
    %v296 = vsub.f32 %v160, %v264
    %v297 = vsub.f32 %v161, %v265
    %v298 = vsub.f32 %v162, %v266
    %299 = vmatprep.subr.mxu0 %v298
    %300 = vmatpush1.msra.mxu0 %v297
    %301 = vmatprep.subr.mxu0 %v296
    %302 = vmatpush1.msra.mxu0 %v295
    %303 = vmatprep.subr.mxu0 %v294
    %304 = vmatpush1.msra.mxu0 %v293
    %305 = vmatprep.subr.mxu0 %v292
    %306 = vmatpush1.msra.mxu0 %v291
    %307 = vmatprep.subr.mxu0 %v290
    %308 = vmatpush1.msra.mxu0 %v289
    %309 = vmatprep.subr.mxu0 %v288
    %310 = vmatpush1.msra.mxu0 %v287
    %311 = vmatprep.subr.mxu0 %v286
    %312 = vmatpush1.msra.mxu0 %v285
    %313 = vmatprep.subr.mxu0 %v284
    %314 = vmatpush1.msra.mxu0 %v283
    %315 = vmatprep.subr.mxu0 %v282
    %316 = vmatpush1.msra.mxu0 %v281
    %317 = vmatprep.subr.mxu0 %v280
    %318 = vmatpush1.msra.mxu0 %v279
    %319 = vmatprep.subr.mxu0 %v278
    %320 = vmatpush1.msra.mxu0 %v277
    %321 = vmatprep.subr.mxu0 %v276
    %322 = vmatpush1.msra.mxu0 %v275
    %323 = vmatprep.subr.mxu0 %v274
    %324 = vmatpush1.msra.mxu0 %v273
    %325 = vmatprep.subr.mxu0 %v272
    %326 = vmatpush1.msra.mxu0 %v271
    %327 = vmatprep.subr.mxu0 %v270
    %328 = vmatpush1.msra.mxu0 %v269
    %329 = vmatprep.subr.mxu0 %v268
    %330 = vmatpush1.msra.mxu0 %v267
    %331 = vmatprep.subr.mxu0 0.0
    %332 = vmatpush2.msra.mxu0 0.0
    %333 = vmatprep.subr.mxu0 0.0
    %334 = vmatpush2.msra.mxu0 0.0
    %335 = vmatprep.subr.mxu0 0.0
    %336 = vmatpush2.msra.mxu0 0.0
    %337 = vmatprep.subr.mxu0 0.0
    %338 = vmatpush2.msra.mxu0 0.0
    %339 = vmatprep.subr.mxu0 0.0
    %340 = vmatpush2.msra.mxu0 0.0
    %341 = vmatprep.subr.mxu0 0.0
    %342 = vmatpush2.msra.mxu0 0.0
    %343 = vmatprep.subr.mxu0 0.0
    %344 = vmatpush2.msra.mxu0 0.0
    %345 = vmatprep.subr.mxu0 0.0
    %346 = vmatpush2.msra.mxu0 0.0
    %347 = vmatprep.subr.mxu0 0.0
    %348 = vmatpush2.msra.mxu0 0.0
    %349 = vmatprep.subr.mxu0 0.0
    %350 = vmatpush2.msra.mxu0 0.0
    %351 = vmatprep.subr.mxu0 0.0
    %352 = vmatpush2.msra.mxu0 0.0
    %353 = vmatprep.subr.mxu0 0.0
    %354 = vmatpush2.msra.mxu0 0.0
    %355 = vmatprep.subr.mxu0 0.0
    %356 = vmatpush2.msra.mxu0 0.0
    %357 = vmatprep.subr.mxu0 0.0
    %358 = vmatpush2.msra.mxu0 0.0
    %359 = vmatprep.subr.mxu0 0.0
    %360 = vmatpush2.msra.mxu0 0.0
    %361 = vmatprep.subr.mxu0 0.0
    %362 = vmatpush2.msra.mxu0 0.0
    %363 = vmatprep.mubr.f32.mxu0 0.0
    %364 = vmatmul.mubr.f32.gmra.mxu0 %v41
    %v365 = vpop.f32.mrf.mxu0
    %v366 = vadd.f32 0.0, %v365
    %v367 = vpop.f32.mrf.mxu0
    %v368 = vadd.f32 0.0, %v367
    %369 = vdwg.mxu0
    %v370 = vxor.u32 %v366, 2147483648
    %v371 = vxor.u32 %v368, 2147483648
    %v372 = vmul.f32 %v370, 1.442695
    %v373 = vpow.pop %v372
    %v374 = vmul.f32 %v371, 1.442695
    %v375 = vpow.pop %v374
    %v376 = vadd.f32 %v373, 1.0
    %v377 = vadd.f32 %v375, 1.0
    %v378 = vrcp.pop %v376
    %v379 = vmul.f32 1.0, %v378
    %v380 = vrcp.pop %v377
    %v381 = vmul.f32 1.0, %v380
    %v382 = vmax.f32 %v366, 0.0
    %v383 = vmax.f32 %v368, 0.0
    %v386 = vrot.slane %v379, 1
    %v387 = vrot.slane %v381, 1
    %v390 = vmul.f32 %v366, %v386
    %v391 = vmul.f32 %v368, %v387
    %v392 = vsub.f32 %v382, %v390
    %v393 = vsub.f32 %v383, %v391
    %v394 = vand.u32 2147483647, %v366
    %v395 = vand.u32 2147483647, %v368
    %v396 = vsub.f32 0.0, %v394
    %v397 = vsub.f32 0.0, %v395
    %v398 = vmul.f32 %v396, 1.442695
    %v399 = vpow.pop %v398
    %v400 = vmul.f32 %v397, 1.442695
    %v401 = vpow.pop %v400
    %v402 = vadd.f32 %v399, 1.0
    %v403 = vlog2.pop %v402
    %v404 = vmul.f32 %v403, 0.6931472
    %v405 = vmul.f32 -0.5, %v399
    %v406 = vadd.f32 %v405, 1.0
    %v407 = vmul.f32 %v406, %v399
    %v408 = vand.u32 2147483647, %v399
    %vm409 = vcmp.lt.f32.partialorder %v408, 0.0004427343
    %v410 = vsel %vm409, %v407, %v404
    %v411 = vadd.f32 %v401, 1.0
    %v412 = vlog2.pop %v411
    %v413 = vmul.f32 %v412, 0.6931472
    %v414 = vmul.f32 -0.5, %v401
    %v415 = vadd.f32 %v414, 1.0
    %v416 = vmul.f32 %v415, %v401
    %v417 = vand.u32 2147483647, %v401
    %vm418 = vcmp.lt.f32.partialorder %v417, 0.0004427343
    %v419 = vsel %vm418, %v416, %v413
    %v420 = vadd.f32 %v392, %v410
    %v421 = vadd.f32 %v393, %v419
    %vm422 = vcmp.ge.s32.totalorder %v39, 0
    %v423 = vsel %vm422, 1, 0
    %v424 = vcvt.s32.f32 %v423
    %v426 = vlaneseq
    %v427 = vshrl.u32 %v426, 7
    %v428 = vsub.s32 0, %v427
    %v429 = vrot.slane %v424, %v428
    %v430 = vlaneseq
    %v431 = vshrl.u32 %v430, 7
    %v432 = vsub.s32 1, %v431
    %v433 = vrot.slane %v424, %v432
    %v436 = vmul.f32 %v420, %v429
    %v437 = vmul.f32 %v421, %v433
    %vm438 = vcmask 1040384
    %v439 = vsel %vm438, %v436, 0.0
    %v440 = vsel %vm438, %v437, 0.0
    %v441 = vadd.f32 %v439, %v440
    %442 = vadd.xlane.f32.xlu0 %v441
    %v443 = vpop.xlane.xlu0 %442
    %v444 = vlaneseq
    %v445 = vand.u32 %v444, 127
    %vm446 = vcmp.eq.s32.totalorder %v445, 0
    %v447 = vsel %vm446, %v443, 0.0
    %448 = vst [vmem:[#allocation7] sm:$0x1] %v447
    // Predicated region
    $region22: #{tpu_custom_call.1} parent=1 // pred_check
      _
    $region23: #{tpu_custom_call.1} parent=1 // pred_check_branch
      %450 = sbr.rel (0) target = $region25
    $region24: #{tpu_custom_call.1} parent=1 // pred_region
      %s452 = ssub.s32 16, 16
      %453 = vsyncadd [#allocation4], %s452
      %s455 = sshll.u32 [#allocation7], 4
      %s456 = int_to_ptr.vmem [resolvable:$true] %s455
      %458 = dma.vmem_to_hbm [thread:$0]  %s456, 16, %s3, [#allocation4]
    $region25: #{tpu_custom_call.1} parent=1 // pred_fallthru
      _
    // Predicated region
    $region26: #{tpu_custom_call.1} parent=1 // pred_check
      _
    $region27: #{tpu_custom_call.1} parent=1 // pred_check_branch
      %460 = sbr.rel (0) target = $region29
    $region28: #{tpu_custom_call.1} parent=1 // pred_region
      %461 = dma.done [#allocation4], 16
    $region29: #{tpu_custom_call.1} parent=1 // pred_fallthru
      _
    %462 = vsyncpa [#allocation3], 1
    %463 = vsyncpa [#allocation6], 1
    %464 = vsyncpa [#allocation4], 1

</llo_original>
